<compile_context>
chip_gen: v5e
topology: v5e:2x2
jax: 0.10.0
libtpu: 0.0.40
codegen_flags: <defaults>
</compile_context>

<pallas_src>
import jax
import jax.numpy as jnp
from jax.experimental import pallas as pl
from jax.experimental.pallas import tpu as pltpu

EPS = 1e-5          # nn.BatchNorm2d default eps
LANE = 128          # TPU vreg lane width
TM = 512            # pixels (N*H*W rows) per grid step (review: 512-1024)


def _round_up(x, m):
    return (x + m - 1) // m * m


def _conv_stats_kernel(p_ref, w_ref, y_ref, s_ref, ss_ref):
    """One im2col MXU matmul per row tile + fused BN partial sums.

    p_ref : (tm, K)           bf16 im2col patches tile, K = 9*Cin
    w_ref : (K, Cout_pad)     bf16 conv weight, zero-padded cols (resident)
    y_ref : (tm, Cout_pad)    f32 pre-BN conv output tile (full-width stores)
    s_ref : (1, 1, Cout_pad)  per-tile sum over rows
    ss_ref: (1, 1, Cout_pad)  per-tile sum of squares over rows
    """
    y = jnp.dot(p_ref[...], w_ref[...], preferred_element_type=jnp.float32)
    y_ref[...] = y
    # Fused BN statistics; the cross-sublane reduction runs on the XLU,
    # off the MXU/VPU critical slots.
    s_ref[...] = jnp.sum(y, axis=0, keepdims=True)[None]
    ss_ref[...] = jnp.sum(y * y, axis=0, keepdims=True)[None]


def conv_module_forward(x_nchw, weight_oihw, bias, gamma, beta):
    """Forward of Conv(...)(x): Conv2d(3x3,s=1,p=1) -> BatchNorm2d -> ReLU.

    `bias` is accepted for interface parity but never used: training-mode
    BatchNorm subtracts the batch mean, which cancels the conv bias exactly.
    (It must be reinstated if eval-mode running stats are ever used.)
    """
    del bias  # cancelled exactly by the training-mode BN mean subtraction
    N, Cin, H, W = x_nchw.shape
    Cout = weight_oihw.shape[0]
    K = 9 * Cin
    M = N * H * W

    # ---- tiling ------------------------------------------------------------
    Cout_pad = _round_up(Cout, LANE)        # lane-dense output, full-width vst
    tm = min(TM, _round_up(M, 8))           # (8,128)-legal row tile
    M_pad = _round_up(M, tm)                # zero-pad rows instead of tm=M
    grid = M_pad // tm

    # ---- wrapper glue (plain XLA): layout + pad + im2col, in bf16 ----------
    # TODO(synk): move im2col into the kernel (halo'd NHWC row tiles resident
    # in VMEM feeding 9 accumulating taps) to drop the 9x HBM materialization
    # of `patches`; also add a K grid axis ("arbitrary") with a VMEM f32
    # accumulator if very large Cin ever pushes the patches tile near VMEM.
    x_nhwc = jnp.transpose(x_nchw, (0, 2, 3, 1)).astype(jnp.bfloat16)
    x_pad = jnp.pad(x_nhwc, ((0, 0), (1, 1), (1, 1), (0, 0)))
    cols = [x_pad[:, kh:kh + H, kw:kw + W, :]
            for kh in range(3) for kw in range(3)]
    patches = jnp.concatenate(cols, axis=-1).reshape(M, K)       # (M, 9*Cin)
    patches = jnp.pad(patches, ((0, M_pad - M), (0, 0)))         # zero rows

    w_mat = jnp.transpose(weight_oihw, (2, 3, 1, 0)).reshape(K, Cout)
    w_mat = jnp.pad(w_mat, ((0, 0), (0, Cout_pad - Cout)))       # zero cols
    w_mat = w_mat.astype(jnp.bfloat16)

    compiler_params = pltpu.CompilerParams(
        dimension_semantics=("parallel",),       # megacore split of M on v7x
        vmem_limit_bytes=48 * 1024 * 1024,       # fits v7x 64 MiB w/ headroom
    )

    # ---- Pallas pass: conv matmul + fused BN partial sums ------------------
    y, psum, psumsq = pl.pallas_call(
        _conv_stats_kernel,
        grid=(grid,),
        in_specs=[
            pl.BlockSpec((tm, K), lambda i: (i, 0)),
            pl.BlockSpec((K, Cout_pad), lambda i: (0, 0)),
        ],
        out_specs=[
            pl.BlockSpec((tm, Cout_pad), lambda i: (i, 0)),
            pl.BlockSpec((1, 1, Cout_pad), lambda i: (i, 0, 0)),
            pl.BlockSpec((1, 1, Cout_pad), lambda i: (i, 0, 0)),
        ],
        out_shape=[
            jax.ShapeDtypeStruct((M_pad, Cout_pad), jnp.float32),
            jax.ShapeDtypeStruct((grid, 1, Cout_pad), jnp.float32),
            jax.ShapeDtypeStruct((grid, 1, Cout_pad), jnp.float32),
        ],
        compiler_params=compiler_params,
    )(patches, w_mat)

    # ---- finalize BN stats (tiny wrapper-side reduction) --------------------
    # NOTE: var = E[x^2] - mean^2 is cancellation-prone for very large /
    # ill-scaled activations; f32 partial sums are adequate at CNN-layer sizes.
    cnt = jnp.float32(M)          # true count: zero pad rows contribute 0
    mean = jnp.sum(psum, axis=(0, 1))[:Cout] / cnt               # (Cout,)
    ex2 = jnp.sum(psumsq, axis=(0, 1))[:Cout] / cnt
    var = jnp.maximum(ex2 - mean * mean, 0.0)                    # biased var
    inv = jax.lax.rsqrt(var + EPS)
    scale = gamma.astype(jnp.float32) * inv
    shift = beta.astype(jnp.float32) - mean * scale

    # ---- epilogue: BN affine + ReLU fused by XLA into the NHWC->NCHW copy ---
    # (replaces the previous Pallas pass 2 + separate transpose: one fewer
    #  full HBM read+write of the activation)
    y_nhwc = y[:M, :Cout].reshape(N, H, W, Cout)
    out = jnp.maximum(y_nhwc * scale + shift, 0.0)
    return jnp.transpose(out, (0, 3, 1, 2)).astype(x_nchw.dtype)


def reference_forward(x, weight, bias, gamma, beta):
    """Pure-JAX f32 reference mirroring PyTorch semantics (for validation)."""
    y = jax.lax.conv_general_dilated(
        x, weight, window_strides=(1, 1), padding=((1, 1), (1, 1)),
        dimension_numbers=("NCHW", "OIHW", "NCHW"))
    y = y + bias[None, :, None, None]
    mean = jnp.mean(y, axis=(0, 2, 3), keepdims=True)
    var = jnp.mean((y - mean) ** 2, axis=(0, 2, 3), keepdims=True)
    y = (y - mean) * jax.lax.rsqrt(var + EPS)
    y = y * gamma[None, :, None, None] + beta[None, :, None, None]
    return jnp.maximum(y, 0.0)


if __name__ == "__main__":
    # Small shapes consistent with the module: NCHW spectrogram-like input.
    N, Cin, Cout, H, W = 2, 4, 8, 16, 16

    key = jax.random.PRNGKey(0)
    kx, kw, kb = jax.random.split(key, 3)

    x = jax.random.normal(kx, (N, Cin, H, W), dtype=jnp.float32)

    # Deterministic parameter init (shapes from nn.Conv2d / nn.BatchNorm2d).
    fan_in = Cin * 3 * 3
    bound = 1.0 / jnp.sqrt(jnp.float32(fan_in))
    weight = jax.random.uniform(kw, (Cout, Cin, 3, 3), jnp.float32,
                                minval=-bound, maxval=bound)
    bias = jax.random.uniform(kb, (Cout,), jnp.float32,
                              minval=-bound, maxval=bound)
    gamma = jnp.ones((Cout,), jnp.float32)   # BatchNorm2d affine weight init
    beta = jnp.zeros((Cout,), jnp.float32)   # BatchNorm2d affine bias init

    fwd = jax.jit(conv_module_forward)
    out = fwd(x, weight, bias, gamma, beta)
    out = jax.block_until_ready(out)

    ref = reference_forward(x, weight, bias, gamma, beta)
    assert out.shape == (N, Cout, H, W), out.shape
    max_err = float(jnp.max(jnp.abs(out - ref)))
    # Tolerance sized for bf16 patches/weights (f32 MXU accumulation) vs the
    # f32 reference; the BN normalization keeps the error relative-scale.
    assert jnp.allclose(out, ref, rtol=5e-2, atol=5e-2), max_err

    print("KERNEL_OK")
</pallas_src>

<mosaic_0001>
module attributes {stable_mosaic.version = 11 : i64} {
  func.func @_conv_stats_kernel(%arg0: i32, %arg1: memref<512x36xbf16, #tpu.memory_space<vmem>>, %arg2: memref<36x128xbf16, #tpu.memory_space<vmem>>, %arg3: memref<512x128xf32, #tpu.memory_space<vmem>>, %arg4: memref<1x1x128xf32, #tpu.memory_space<vmem>>, %arg5: memref<1x1x128xf32, #tpu.memory_space<vmem>>) attributes {dimension_semantics = [#tpu.dimension_semantics<parallel>], iteration_bounds = array<i64: 1>, scalar_prefetch = 0 : i64, scratch_operands = 0 : i64, tpu.core_type = #tpu.core_type<tc>, window_params = [{transform_indices = @transform_0, window_bounds = array<i64: 512, 36>}, {pipeline_mode = #tpu.pipeline_mode<synchronous>, transform_indices = @transform_1, window_bounds = array<i64: 36, 128>}, {transform_indices = @transform_2, window_bounds = array<i64: 512, 128>}, {transform_indices = @transform_3, window_bounds = array<i64: 1, 1, 128>}, {transform_indices = @transform_4, window_bounds = array<i64: 1, 1, 128>}]} {
    %c0 = arith.constant 0 : index
    %c0_0 = arith.constant 0 : index
    %0 = vector.load %arg1[%c0, %c0_0] : memref<512x36xbf16, #tpu.memory_space<vmem>>, vector<512x36xbf16>
    %c0_1 = arith.constant 0 : index
    %c0_2 = arith.constant 0 : index
    %1 = vector.load %arg2[%c0_1, %c0_2] : memref<36x128xbf16, #tpu.memory_space<vmem>>, vector<36x128xbf16>
    %cst = arith.constant dense<0.000000e+00> : vector<512x128xf32>
    %2 = tpu.matmul %0, %1, %cst {dimension_numbers = #tpu.dot_dimension_numbers<[1], [0], [0], [1], [0, 0, 1, 1], [], []>} : vector<512x36xbf16>, vector<36x128xbf16>, vector<512x128xf32> -> vector<512x128xf32>
    %c0_3 = arith.constant 0 : index
    %c0_4 = arith.constant 0 : index
    %3 = vector.load %arg3[%c0_3, %c0_4] : memref<512x128xf32, #tpu.memory_space<vmem>>, vector<512x128xf32>
    tpu.vector_store %arg3[%c0_3, %c0_4], %2 {strides = array<i32>} : memref<512x128xf32, #tpu.memory_space<vmem>>, vector<512x128xf32>,
    %cst_5 = arith.constant dense<0.000000e+00> : vector<128xf32>
    %4 = vector.multi_reduction <add>, %2, %cst_5 [0] : vector<512x128xf32> to vector<128xf32>
    %5 = vector.shape_cast %4 : vector<128xf32> to vector<1x128xf32>
    %6 = vector.shape_cast %5 : vector<1x128xf32> to vector<1x1x128xf32>
    %c0_6 = arith.constant 0 : index
    %c0_7 = arith.constant 0 : index
    %c0_8 = arith.constant 0 : index
    %7 = vector.load %arg4[%c0_6, %c0_7, %c0_8] : memref<1x1x128xf32, #tpu.memory_space<vmem>>, vector<1x1x128xf32>
    tpu.vector_store %arg4[%c0_6, %c0_7, %c0_8], %6 {strides = array<i32>} : memref<1x1x128xf32, #tpu.memory_space<vmem>>, vector<1x1x128xf32>,
    %8 = arith.mulf %2, %2 : vector<512x128xf32>
    %cst_9 = arith.constant dense<0.000000e+00> : vector<128xf32>
    %9 = vector.multi_reduction <add>, %8, %cst_9 [0] : vector<512x128xf32> to vector<128xf32>
    %10 = vector.shape_cast %9 : vector<128xf32> to vector<1x128xf32>
    %11 = vector.shape_cast %10 : vector<1x128xf32> to vector<1x1x128xf32>
    %c0_10 = arith.constant 0 : index
    %c0_11 = arith.constant 0 : index
    %c0_12 = arith.constant 0 : index
    %12 = vector.load %arg5[%c0_10, %c0_11, %c0_12] : memref<1x1x128xf32, #tpu.memory_space<vmem>>, vector<1x1x128xf32>
    tpu.vector_store %arg5[%c0_10, %c0_11, %c0_12], %11 {strides = array<i32>} : memref<1x1x128xf32, #tpu.memory_space<vmem>>, vector<1x1x128xf32>,
    return
  }
  func.func @transform_0(%arg0: i32) -> (i32, i32) {
    %c0_i32 = arith.constant 0 : i32
    %c0_i32_0 = arith.constant 0 : i32
    return %arg0, %c0_i32 : i32, i32
  }
  func.func @transform_1(%arg0: i32) -> (i32, i32) {
    %c0_i32 = arith.constant 0 : i32
    %c0_i32_0 = arith.constant 0 : i32
    %c0_i32_1 = arith.constant 0 : i32
    return %c0_i32, %c0_i32_0 : i32, i32
  }
  func.func @transform_2(%arg0: i32) -> (i32, i32) {
    %c0_i32 = arith.constant 0 : i32
    %c0_i32_0 = arith.constant 0 : i32
    return %arg0, %c0_i32 : i32, i32
  }
  func.func @transform_3(%arg0: i32) -> (i32, i32, i32) {
    %c0_i32 = arith.constant 0 : i32
    %c0_i32_0 = arith.constant 0 : i32
    %c0_i32_1 = arith.constant 0 : i32
    return %arg0, %c0_i32, %c0_i32_0 : i32, i32, i32
  }
  func.func @transform_4(%arg0: i32) -> (i32, i32, i32) {
    %c0_i32 = arith.constant 0 : i32
    %c0_i32_0 = arith.constant 0 : i32
    %c0_i32_1 = arith.constant 0 : i32
    return %arg0, %c0_i32, %c0_i32_0 : i32, i32, i32
  }
}

</mosaic_0001>

<llo_original>
// kernel: conv_module_forward.1
$region0: #{conv_module_forward.1}
  #allocation0 [shape = 'u32[]', space=smem, size = 0x4, offset = 0x4, fixed_abs, tag = 'smem constant byte address 0x4 - core index']
  #allocation1 [shape = 'u32[72,128]{1,0:T(1,128)}', space=vmem, size = 0x9000, scoped, tag = 'internal scratch']
  %s0 = inlined_call_operand.vmem [shape: bf16[512,36], index: 0, kind: input, shape index: {}]
  %s1 = inlined_call_operand.vmem [shape: bf16[36,128], index: 1, kind: input, shape index: {}]
  %s2 = inlined_call_operand.vmem [shape: f32[512,128], index: 2, kind: output, shape index: {0}]
  %s3 = inlined_call_operand.vmem [shape: f32[1,1,128], index: 3, kind: output, shape index: {1}]
  %s4 = inlined_call_operand.vmem [shape: f32[1,1,128], index: 4, kind: output, shape index: {2}]
  %5 = xla_tuple %s2, %s3, %s4
  %s6 = sld [smem:[#allocation0]]
  $region34: #{conv_module_forward.1} parent=0
    _
  %s8 = ssub.s32 1, %s6
  %s9 = scalar_select 0, %s8, %s6
  // Predicated region
  $region2: #{conv_module_forward.1} parent=0 // pred_check
    _
  $region3: #{conv_module_forward.1} parent=0 // pred_check_branch
    %11 = sbr.rel (0) target = $region5
  $region4: #{conv_module_forward.1} parent=0 // pred_region
    _
  $region5: #{conv_module_forward.1} parent=0 // pred_fallthru
    _
  // Predicated region
  $region6: #{conv_module_forward.1} parent=0 // pred_check
    _
  $region7: #{conv_module_forward.1} parent=0 // pred_check_branch
    %13 = sbr.rel (0) target = $region9
  $region8: #{conv_module_forward.1} parent=0 // pred_region
    _
  $region9: #{conv_module_forward.1} parent=0 // pred_fallthru
    _
  %v15 = vld [vmem:[%s0] sm:$0xf]
  %v16 = vld [vmem:[%s0 + $0x4] sm:$0xf]
  %v17 = vld [vmem:[%s0 + $0x8] sm:$0xf]
  %v18 = vld [vmem:[%s0 + $0xc] sm:$0xf]
  %v19 = vld [vmem:[%s0 + $0x10] sm:$0xf]
  %v20 = vld [vmem:[%s0 + $0x14] sm:$0xf]
  %v21 = vld [vmem:[%s0 + $0x18] sm:$0xf]
  %v22 = vld [vmem:[%s0 + $0x1c] sm:$0xf]
  %v23 = vld [vmem:[%s0 + $0x20] sm:$0xf]
  %v24 = vld [vmem:[%s0 + $0x24] sm:$0xf]
  %v25 = vld [vmem:[%s0 + $0x28] sm:$0xf]
  %v26 = vld [vmem:[%s0 + $0x2c] sm:$0xf]
  %v27 = vld [vmem:[%s0 + $0x30] sm:$0xf]
  %v28 = vld [vmem:[%s0 + $0x34] sm:$0xf]
  %v29 = vld [vmem:[%s0 + $0x38] sm:$0xf]
  %v30 = vld [vmem:[%s0 + $0x3c] sm:$0xf]
  %v31 = vld [vmem:[%s0 + $0x40] sm:$0xf]
  %v32 = vld [vmem:[%s0 + $0x44] sm:$0xf]
  %v33 = vld [vmem:[%s0 + $0x48] sm:$0xf]
  %v34 = vld [vmem:[%s0 + $0x4c] sm:$0xf]
  %v35 = vld [vmem:[%s0 + $0x50] sm:$0xf]
  %v36 = vld [vmem:[%s0 + $0x54] sm:$0xf]
  %v37 = vld [vmem:[%s0 + $0x58] sm:$0xf]
  %v38 = vld [vmem:[%s0 + $0x5c] sm:$0xf]
  %v39 = vld [vmem:[%s0 + $0x60] sm:$0xf]
  %v40 = vld [vmem:[%s0 + $0x64] sm:$0xf]
  %v41 = vld [vmem:[%s0 + $0x68] sm:$0xf]
  %v42 = vld [vmem:[%s0 + $0x6c] sm:$0xf]
  %v43 = vld [vmem:[%s0 + $0x70] sm:$0xf]
  %v44 = vld [vmem:[%s0 + $0x74] sm:$0xf]
  %v45 = vld [vmem:[%s0 + $0x78] sm:$0xf]
  %v46 = vld [vmem:[%s0 + $0x7c] sm:$0xf]
  %v47 = vld [vmem:[%s0 + $0x80] sm:$0xf]
  %v48 = vld [vmem:[%s0 + $0x84] sm:$0xf]
  %v49 = vld [vmem:[%s0 + $0x88] sm:$0xf]
  %v50 = vld [vmem:[%s0 + $0x8c] sm:$0xf]
  %v51 = vld [vmem:[%s0 + $0x90] sm:$0xf]
  %v52 = vld [vmem:[%s0 + $0x94] sm:$0xf]
  %v53 = vld [vmem:[%s0 + $0x98] sm:$0xf]
  %v54 = vld [vmem:[%s0 + $0x9c] sm:$0xf]
  %v55 = vld [vmem:[%s0 + $0xa0] sm:$0xf]
  %v56 = vld [vmem:[%s0 + $0xa4] sm:$0xf]
  %v57 = vld [vmem:[%s0 + $0xa8] sm:$0xf]
  %v58 = vld [vmem:[%s0 + $0xac] sm:$0xf]
  %v59 = vld [vmem:[%s0 + $0xb0] sm:$0xf]
  %v60 = vld [vmem:[%s0 + $0xb4] sm:$0xf]
  %v61 = vld [vmem:[%s0 + $0xb8] sm:$0xf]
  %v62 = vld [vmem:[%s0 + $0xbc] sm:$0xf]
  %v63 = vld [vmem:[%s0 + $0xc0] sm:$0xf]
  %v64 = vld [vmem:[%s0 + $0xc4] sm:$0xf]
  %v65 = vld [vmem:[%s0 + $0xc8] sm:$0xf]
  %v66 = vld [vmem:[%s0 + $0xcc] sm:$0xf]
  %v67 = vld [vmem:[%s0 + $0xd0] sm:$0xf]
  %v68 = vld [vmem:[%s0 + $0xd4] sm:$0xf]
  %v69 = vld [vmem:[%s0 + $0xd8] sm:$0xf]
  %v70 = vld [vmem:[%s0 + $0xdc] sm:$0xf]
  %v71 = vld [vmem:[%s0 + $0xe0] sm:$0xf]
  %v72 = vld [vmem:[%s0 + $0xe4] sm:$0xf]
  %v73 = vld [vmem:[%s0 + $0xe8] sm:$0xf]
  %v74 = vld [vmem:[%s0 + $0xec] sm:$0xf]
  %v75 = vld [vmem:[%s0 + $0xf0] sm:$0xf]
  %v76 = vld [vmem:[%s0 + $0xf4] sm:$0xf]
  %v77 = vld [vmem:[%s0 + $0xf8] sm:$0xf]
  %v78 = vld [vmem:[%s0 + $0xfc] sm:$0xf]
  %v79 = vld [vmem:[%s1] sm:$0xf]
  %v80 = vld [vmem:[%s1 + $0x4] sm:$0xf]
  %v81 = vld [vmem:[%s1 + $0x8] sm:$0xf]
  %v82 = vld [vmem:[%s1 + $0xc] sm:$0xf]
  %v83 = vld [vmem:[%s1 + $0x10] sm:$0x3]
  %v148 = vunpack.c.l.b16 %v15
  %v149 = vunpack.c.l.b16 %v16
  %v150 = vunpack.c.l.b16 %v17
  %v151 = vunpack.c.l.b16 %v18
  %v152 = vunpack.c.l.b16 %v19
  %v153 = vunpack.c.l.b16 %v20
  %v154 = vunpack.c.l.b16 %v21
  %v155 = vunpack.c.l.b16 %v22
  %v156 = vunpack.c.l.b16 %v23
  %v157 = vunpack.c.l.b16 %v24
  %v158 = vunpack.c.l.b16 %v25
  %v159 = vunpack.c.l.b16 %v26
  %v160 = vunpack.c.l.b16 %v27
  %v161 = vunpack.c.l.b16 %v28
  %v162 = vunpack.c.l.b16 %v29
  %v163 = vunpack.c.l.b16 %v30
  %v164 = vunpack.c.l.b16 %v31
  %v165 = vunpack.c.l.b16 %v32
  %v166 = vunpack.c.l.b16 %v33
  %v167 = vunpack.c.l.b16 %v34
  %v168 = vunpack.c.l.b16 %v35
  %v169 = vunpack.c.l.b16 %v36
  %v170 = vunpack.c.l.b16 %v37
  %v171 = vunpack.c.l.b16 %v38
  %v172 = vunpack.c.l.b16 %v39
  %v173 = vunpack.c.l.b16 %v40
  %v174 = vunpack.c.l.b16 %v41
  %v175 = vunpack.c.l.b16 %v42
  %v176 = vunpack.c.l.b16 %v43
  %v177 = vunpack.c.l.b16 %v44
  %v178 = vunpack.c.l.b16 %v45
  %v179 = vunpack.c.l.b16 %v46
  %v180 = vunpack.c.l.b16 %v47
  %v181 = vunpack.c.l.b16 %v48
  %v182 = vunpack.c.l.b16 %v49
  %v183 = vunpack.c.l.b16 %v50
  %v184 = vunpack.c.l.b16 %v51
  %v185 = vunpack.c.l.b16 %v52
  %v186 = vunpack.c.l.b16 %v53
  %v187 = vunpack.c.l.b16 %v54
  %v188 = vunpack.c.l.b16 %v55
  %v189 = vunpack.c.l.b16 %v56
  %v190 = vunpack.c.l.b16 %v57
  %v191 = vunpack.c.l.b16 %v58
  %v192 = vunpack.c.l.b16 %v59
  %v193 = vunpack.c.l.b16 %v60
  %v194 = vunpack.c.l.b16 %v61
  %v195 = vunpack.c.l.b16 %v62
  %v196 = vunpack.c.l.b16 %v63
  %v197 = vunpack.c.l.b16 %v64
  %v198 = vunpack.c.l.b16 %v65
  %v199 = vunpack.c.l.b16 %v66
  %v200 = vunpack.c.l.b16 %v67
  %v201 = vunpack.c.l.b16 %v68
  %v202 = vunpack.c.l.b16 %v69
  %v203 = vunpack.c.l.b16 %v70
  %v204 = vunpack.c.l.b16 %v71
  %v205 = vunpack.c.l.b16 %v72
  %v206 = vunpack.c.l.b16 %v73
  %v207 = vunpack.c.l.b16 %v74
  %v208 = vunpack.c.l.b16 %v75
  %v209 = vunpack.c.l.b16 %v76
  %v210 = vunpack.c.l.b16 %v77
  %v211 = vunpack.c.l.b16 %v78
  %v212 = vpack.c.b16 %v149, %v148
  %v213 = vpack.c.b16 %v151, %v150
  %v214 = vpack.c.b16 %v153, %v152
  %v215 = vpack.c.b16 %v155, %v154
  %v216 = vpack.c.b16 %v157, %v156
  %v217 = vpack.c.b16 %v159, %v158
  %v218 = vpack.c.b16 %v161, %v160
  %v219 = vpack.c.b16 %v163, %v162
  %v220 = vpack.c.b16 %v165, %v164
  %v221 = vpack.c.b16 %v167, %v166
  %v222 = vpack.c.b16 %v169, %v168
  %v223 = vpack.c.b16 %v171, %v170
  %v224 = vpack.c.b16 %v173, %v172
  %v225 = vpack.c.b16 %v175, %v174
  %v226 = vpack.c.b16 %v177, %v176
  %v227 = vpack.c.b16 %v179, %v178
  %v228 = vpack.c.b16 %v181, %v180
  %v229 = vpack.c.b16 %v183, %v182
  %v230 = vpack.c.b16 %v185, %v184
  %v231 = vpack.c.b16 %v187, %v186
  %v232 = vpack.c.b16 %v189, %v188
  %v233 = vpack.c.b16 %v191, %v190
  %v234 = vpack.c.b16 %v193, %v192
  %v235 = vpack.c.b16 %v195, %v194
  %v236 = vpack.c.b16 %v197, %v196
  %v237 = vpack.c.b16 %v199, %v198
  %v238 = vpack.c.b16 %v201, %v200
  %v239 = vpack.c.b16 %v203, %v202
  %v240 = vpack.c.b16 %v205, %v204
  %v241 = vpack.c.b16 %v207, %v206
  %v242 = vpack.c.b16 %v209, %v208
  %v243 = vpack.c.b16 %v211, %v210
  %v249 = vunpack.c.l.b16 %v79
  %v250 = vunpack.c.l.b16 %v80
  %v251 = vunpack.c.l.b16 %v81
  %v252 = vunpack.c.l.b16 %v82
  %v253 = vunpack.c.l.b16 %v83
  %v254 = vpack.c.b16 %v250, %v249
  %v255 = vpack.c.b16 %v252, %v251
  %v256 = vpack.c.b16 %v253, %v253
  %vm259 = vcmask 293888
  %v261 = vsel %vm259, %v212, 0
  %v264 = vsel %vm259, %v213, 0
  %v267 = vsel %vm259, %v214, 0
  %v270 = vsel %vm259, %v215, 0
  %v273 = vsel %vm259, %v216, 0
  %v276 = vsel %vm259, %v217, 0
  %v279 = vsel %vm259, %v218, 0
  %v282 = vsel %vm259, %v219, 0
  %v285 = vsel %vm259, %v220, 0
  %v288 = vsel %vm259, %v221, 0
  %v291 = vsel %vm259, %v222, 0
  %v294 = vsel %vm259, %v223, 0
  %v297 = vsel %vm259, %v224, 0
  %v300 = vsel %vm259, %v225, 0
  %v303 = vsel %vm259, %v226, 0
  %v306 = vsel %vm259, %v227, 0
  %v309 = vsel %vm259, %v228, 0
  %v312 = vsel %vm259, %v229, 0
  %v315 = vsel %vm259, %v230, 0
  %v318 = vsel %vm259, %v231, 0
  %v321 = vsel %vm259, %v232, 0
  %v324 = vsel %vm259, %v233, 0
  %v327 = vsel %vm259, %v234, 0
  %v330 = vsel %vm259, %v235, 0
  %v333 = vsel %vm259, %v236, 0
  %v336 = vsel %vm259, %v237, 0
  %v339 = vsel %vm259, %v238, 0
  %v342 = vsel %vm259, %v239, 0
  %v345 = vsel %vm259, %v240, 0
  %v348 = vsel %vm259, %v241, 0
  %v351 = vsel %vm259, %v242, 0
  %v354 = vsel %vm259, %v243, 0
  %vm356 = vcmask 1041408
  %v358 = vsel %vm356, %v256, 0
  %360 = vmatpush.bf16.msra.mxu0 0
  %361 = vmatpush.bf16.msra.mxu0 0
  %362 = vmatpush.bf16.msra.mxu0 0
  %363 = vmatpush.bf16.msra.mxu0 0
  %364 = vmatpush.bf16.msra.mxu0 0
  %365 = vmatpush.bf16.msra.mxu0 %v358
  %366 = vmatpush.bf16.msra.mxu0 %v255
  %367 = vmatpush.bf16.msra.mxu0 %v254
  %368 = vmatmul.bf16.gmra.mxu0 %v261
  %v369 = vpop.f32.mrf.mxu0
  %v370 = vadd.f32 0.0, %v369
  %v371 = vpop.f32.mrf.mxu0
  %v372 = vadd.f32 0.0, %v371
  %373 = vmatmul.bf16.gmra.mxu0 %v264
  %v374 = vpop.f32.mrf.mxu0
  %v375 = vadd.f32 0.0, %v374
  %v376 = vpop.f32.mrf.mxu0
  %v377 = vadd.f32 0.0, %v376
  %378 = vmatmul.bf16.gmra.mxu0 %v267
  %v379 = vpop.f32.mrf.mxu0
  %v380 = vadd.f32 0.0, %v379
  %v381 = vpop.f32.mrf.mxu0
  %v382 = vadd.f32 0.0, %v381
  %383 = vmatmul.bf16.gmra.mxu0 %v270
  %v384 = vpop.f32.mrf.mxu0
  %v385 = vadd.f32 0.0, %v384
  %v386 = vpop.f32.mrf.mxu0
  %v387 = vadd.f32 0.0, %v386
  %388 = vmatmul.bf16.gmra.mxu0 %v273
  %v389 = vpop.f32.mrf.mxu0
  %v390 = vadd.f32 0.0, %v389
  %v391 = vpop.f32.mrf.mxu0
  %v392 = vadd.f32 0.0, %v391
  %393 = vmatmul.bf16.gmra.mxu0 %v276
  %v394 = vpop.f32.mrf.mxu0
  %v395 = vadd.f32 0.0, %v394
  %v396 = vpop.f32.mrf.mxu0
  %v397 = vadd.f32 0.0, %v396
  %398 = vmatmul.bf16.gmra.mxu0 %v279
  %v399 = vpop.f32.mrf.mxu0
  %v400 = vadd.f32 0.0, %v399
  %v401 = vpop.f32.mrf.mxu0
  %v402 = vadd.f32 0.0, %v401
  %403 = vmatmul.bf16.gmra.mxu0 %v282
  %v404 = vpop.f32.mrf.mxu0
  %v405 = vadd.f32 0.0, %v404
  %v406 = vpop.f32.mrf.mxu0
  %v407 = vadd.f32 0.0, %v406
  %408 = vmatmul.bf16.gmra.mxu0 %v285
  %v409 = vpop.f32.mrf.mxu0
  %v410 = vadd.f32 0.0, %v409
  %v411 = vpop.f32.mrf.mxu0
  %v412 = vadd.f32 0.0, %v411
  %413 = vmatmul.bf16.gmra.mxu0 %v288
  %v414 = vpop.f32.mrf.mxu0
  %v415 = vadd.f32 0.0, %v414
  %v416 = vpop.f32.mrf.mxu0
  %v417 = vadd.f32 0.0, %v416
  %418 = vmatmul.bf16.gmra.mxu0 %v291
  %v419 = vpop.f32.mrf.mxu0
  %v420 = vadd.f32 0.0, %v419
  %v421 = vpop.f32.mrf.mxu0
  %v422 = vadd.f32 0.0, %v421
  %423 = vmatmul.bf16.gmra.mxu0 %v294
  %v424 = vpop.f32.mrf.mxu0
  %v425 = vadd.f32 0.0, %v424
  %v426 = vpop.f32.mrf.mxu0
  %v427 = vadd.f32 0.0, %v426
  %428 = vmatmul.bf16.gmra.mxu0 %v297
  %v429 = vpop.f32.mrf.mxu0
  %v430 = vadd.f32 0.0, %v429
  %v431 = vpop.f32.mrf.mxu0
  %v432 = vadd.f32 0.0, %v431
  %433 = vmatmul.bf16.gmra.mxu0 %v300
  %v434 = vpop.f32.mrf.mxu0
  %v435 = vadd.f32 0.0, %v434
  %v436 = vpop.f32.mrf.mxu0
  %v437 = vadd.f32 0.0, %v436
  %438 = vmatmul.bf16.gmra.mxu0 %v303
  %v439 = vpop.f32.mrf.mxu0
  %v440 = vadd.f32 0.0, %v439
  %v441 = vpop.f32.mrf.mxu0
  %v442 = vadd.f32 0.0, %v441
  %443 = vmatmul.bf16.gmra.mxu0 %v306
  %v444 = vpop.f32.mrf.mxu0
  %v445 = vadd.f32 0.0, %v444
  %v446 = vpop.f32.mrf.mxu0
  %v447 = vadd.f32 0.0, %v446
  %448 = vmatmul.bf16.gmra.mxu0 %v309
  %v449 = vpop.f32.mrf.mxu0
  %v450 = vadd.f32 0.0, %v449
  %v451 = vpop.f32.mrf.mxu0
  %v452 = vadd.f32 0.0, %v451
  %453 = vmatmul.bf16.gmra.mxu0 %v312
  %v454 = vpop.f32.mrf.mxu0
  %v455 = vadd.f32 0.0, %v454
  %v456 = vpop.f32.mrf.mxu0
  %v457 = vadd.f32 0.0, %v456
  %458 = vmatmul.bf16.gmra.mxu0 %v315
  %v459 = vpop.f32.mrf.mxu0
  %v460 = vadd.f32 0.0, %v459
  %v461 = vpop.f32.mrf.mxu0
  %v462 = vadd.f32 0.0, %v461
  %463 = vmatmul.bf16.gmra.mxu0 %v318
  %v464 = vpop.f32.mrf.mxu0
  %v465 = vadd.f32 0.0, %v464
  %v466 = vpop.f32.mrf.mxu0
  %v467 = vadd.f32 0.0, %v466
  %468 = vmatmul.bf16.gmra.mxu0 %v321
  %v469 = vpop.f32.mrf.mxu0
  %v470 = vadd.f32 0.0, %v469
  %v471 = vpop.f32.mrf.mxu0
  %v472 = vadd.f32 0.0, %v471
  %473 = vmatmul.bf16.gmra.mxu0 %v324
  %v474 = vpop.f32.mrf.mxu0
  %v475 = vadd.f32 0.0, %v474
  %v476 = vpop.f32.mrf.mxu0
  %v477 = vadd.f32 0.0, %v476
  %478 = vmatmul.bf16.gmra.mxu0 %v327
  %v479 = vpop.f32.mrf.mxu0
  %v480 = vadd.f32 0.0, %v479
  %v481 = vpop.f32.mrf.mxu0
  %v482 = vadd.f32 0.0, %v481
  %483 = vmatmul.bf16.gmra.mxu0 %v330
  %v484 = vpop.f32.mrf.mxu0
  %v485 = vadd.f32 0.0, %v484
  %v486 = vpop.f32.mrf.mxu0
  %v487 = vadd.f32 0.0, %v486
  %488 = vmatmul.bf16.gmra.mxu0 %v333
  %v489 = vpop.f32.mrf.mxu0
  %v490 = vadd.f32 0.0, %v489
  %v491 = vpop.f32.mrf.mxu0
  %v492 = vadd.f32 0.0, %v491
  %493 = vmatmul.bf16.gmra.mxu0 %v336
  %v494 = vpop.f32.mrf.mxu0
  %v495 = vadd.f32 0.0, %v494
  %v496 = vpop.f32.mrf.mxu0
  %v497 = vadd.f32 0.0, %v496
  %498 = vmatmul.bf16.gmra.mxu0 %v339
  %v499 = vpop.f32.mrf.mxu0
  %v500 = vadd.f32 0.0, %v499
  %v501 = vpop.f32.mrf.mxu0
  %v502 = vadd.f32 0.0, %v501
  %503 = vmatmul.bf16.gmra.mxu0 %v342
  %v504 = vpop.f32.mrf.mxu0
  %v505 = vadd.f32 0.0, %v504
  %v506 = vpop.f32.mrf.mxu0
  %v507 = vadd.f32 0.0, %v506
  %508 = vmatmul.bf16.gmra.mxu0 %v345
  %v509 = vpop.f32.mrf.mxu0
  %v510 = vadd.f32 0.0, %v509
  %v511 = vpop.f32.mrf.mxu0
  %v512 = vadd.f32 0.0, %v511
  %513 = vmatmul.bf16.gmra.mxu0 %v348
  %v514 = vpop.f32.mrf.mxu0
  %v515 = vadd.f32 0.0, %v514
  %v516 = vpop.f32.mrf.mxu0
  %v517 = vadd.f32 0.0, %v516
  %518 = vmatmul.bf16.gmra.mxu0 %v351
  %v519 = vpop.f32.mrf.mxu0
  %v520 = vadd.f32 0.0, %v519
  %v521 = vpop.f32.mrf.mxu0
  %v522 = vadd.f32 0.0, %v521
  %523 = vmatmul.bf16.gmra.mxu0 %v354
  %v524 = vpop.f32.mrf.mxu0
  %v525 = vadd.f32 0.0, %v524
  %v526 = vpop.f32.mrf.mxu0
  %v527 = vadd.f32 0.0, %v526
  %528 = vdwg.mxu0
  %529 = vst [vmem:[%s2] sm:$0xff] %v370
  %530 = vst [vmem:[%s2 + $0x8] sm:$0xff] %v372
  %531 = vst [vmem:[%s2 + $0x10] sm:$0xff] %v375
  %532 = vst [vmem:[%s2 + $0x18] sm:$0xff] %v377
  %533 = vst [vmem:[%s2 + $0x20] sm:$0xff] %v380
  %534 = vst [vmem:[%s2 + $0x28] sm:$0xff] %v382
  %535 = vst [vmem:[%s2 + $0x30] sm:$0xff] %v385
  %536 = vst [vmem:[%s2 + $0x38] sm:$0xff] %v387
  %537 = vst [vmem:[%s2 + $0x40] sm:$0xff] %v390
  %538 = vst [vmem:[%s2 + $0x48] sm:$0xff] %v392
  %539 = vst [vmem:[%s2 + $0x50] sm:$0xff] %v395
  %540 = vst [vmem:[%s2 + $0x58] sm:$0xff] %v397
  %541 = vst [vmem:[%s2 + $0x60] sm:$0xff] %v400
  %542 = vst [vmem:[%s2 + $0x68] sm:$0xff] %v402
  %543 = vst [vmem:[%s2 + $0x70] sm:$0xff] %v405
  %544 = vst [vmem:[%s2 + $0x78] sm:$0xff] %v407
  %545 = vst [vmem:[%s2 + $0x80] sm:$0xff] %v410
  %546 = vst [vmem:[%s2 + $0x88] sm:$0xff] %v412
  %547 = vst [vmem:[%s2 + $0x90] sm:$0xff] %v415
  %548 = vst [vmem:[%s2 + $0x98] sm:$0xff] %v417
  %549 = vst [vmem:[%s2 + $0xa0] sm:$0xff] %v420
  %550 = vst [vmem:[%s2 + $0xa8] sm:$0xff] %v422
  %551 = vst [vmem:[%s2 + $0xb0] sm:$0xff] %v425
  %552 = vst [vmem:[%s2 + $0xb8] sm:$0xff] %v427
  %553 = vst [vmem:[%s2 + $0xc0] sm:$0xff] %v430
  %554 = vst [vmem:[%s2 + $0xc8] sm:$0xff] %v432
  %555 = vst [vmem:[%s2 + $0xd0] sm:$0xff] %v435
  %556 = vst [vmem:[%s2 + $0xd8] sm:$0xff] %v437
  %557 = vst [vmem:[%s2 + $0xe0] sm:$0xff] %v440
  %558 = vst [vmem:[%s2 + $0xe8] sm:$0xff] %v442
  %559 = vst [vmem:[%s2 + $0xf0] sm:$0xff] %v445
  %560 = vst [vmem:[%s2 + $0xf8] sm:$0xff] %v447
  %561 = vst [vmem:[%s2 + $0x100] sm:$0xff] %v450
  %562 = vst [vmem:[%s2 + $0x108] sm:$0xff] %v452
  %563 = vst [vmem:[%s2 + $0x110] sm:$0xff] %v455
  %564 = vst [vmem:[%s2 + $0x118] sm:$0xff] %v457
  %565 = vst [vmem:[%s2 + $0x120] sm:$0xff] %v460
  %566 = vst [vmem:[%s2 + $0x128] sm:$0xff] %v462
  %567 = vst [vmem:[%s2 + $0x130] sm:$0xff] %v465
  %568 = vst [vmem:[%s2 + $0x138] sm:$0xff] %v467
  %569 = vst [vmem:[%s2 + $0x140] sm:$0xff] %v470
  %570 = vst [vmem:[%s2 + $0x148] sm:$0xff] %v472
  %571 = vst [vmem:[%s2 + $0x150] sm:$0xff] %v475
  %572 = vst [vmem:[%s2 + $0x158] sm:$0xff] %v477
  %573 = vst [vmem:[%s2 + $0x160] sm:$0xff] %v480
  %574 = vst [vmem:[%s2 + $0x168] sm:$0xff] %v482
  %575 = vst [vmem:[%s2 + $0x170] sm:$0xff] %v485
  %576 = vst [vmem:[%s2 + $0x178] sm:$0xff] %v487
  %577 = vst [vmem:[%s2 + $0x180] sm:$0xff] %v490
  %578 = vst [vmem:[%s2 + $0x188] sm:$0xff] %v492
  %579 = vst [vmem:[%s2 + $0x190] sm:$0xff] %v495
  %580 = vst [vmem:[%s2 + $0x198] sm:$0xff] %v497
  %581 = vst [vmem:[%s2 + $0x1a0] sm:$0xff] %v500
  %582 = vst [vmem:[%s2 + $0x1a8] sm:$0xff] %v502
  %583 = vst [vmem:[%s2 + $0x1b0] sm:$0xff] %v505
  %584 = vst [vmem:[%s2 + $0x1b8] sm:$0xff] %v507
  %585 = vst [vmem:[%s2 + $0x1c0] sm:$0xff] %v510
  %586 = vst [vmem:[%s2 + $0x1c8] sm:$0xff] %v512
  %587 = vst [vmem:[%s2 + $0x1d0] sm:$0xff] %v515
  %588 = vst [vmem:[%s2 + $0x1d8] sm:$0xff] %v517
  %589 = vst [vmem:[%s2 + $0x1e0] sm:$0xff] %v520
  %590 = vst [vmem:[%s2 + $0x1e8] sm:$0xff] %v522
  %591 = vst [vmem:[%s2 + $0x1f0] sm:$0xff] %v525
  %592 = vst [vmem:[%s2 + $0x1f8] sm:$0xff] %v527
  %v593 = vadd.f32 %v370, %v372
  %v594 = vadd.f32 %v593, %v375
  %v595 = vadd.f32 %v594, %v377
  %v596 = vadd.f32 %v595, %v380
  %v597 = vadd.f32 %v596, %v382
  %v598 = vadd.f32 %v597, %v385
  %v599 = vadd.f32 %v598, %v387
  %v600 = vadd.f32 %v599, %v390
  %v601 = vadd.f32 %v600, %v392
  %v602 = vadd.f32 %v601, %v395
  %v603 = vadd.f32 %v602, %v397
  %v604 = vadd.f32 %v603, %v400
  %v605 = vadd.f32 %v604, %v402
  %v606 = vadd.f32 %v605, %v405
  %v607 = vadd.f32 %v606, %v407
  %v608 = vadd.f32 %v607, %v410
  %v609 = vadd.f32 %v608, %v412
  %v610 = vadd.f32 %v609, %v415
  %v611 = vadd.f32 %v610, %v417
  %v612 = vadd.f32 %v611, %v420
  %v613 = vadd.f32 %v612, %v422
  %v614 = vadd.f32 %v613, %v425
  %v615 = vadd.f32 %v614, %v427
  %v616 = vadd.f32 %v615, %v430
  %v617 = vadd.f32 %v616, %v432
  %v618 = vadd.f32 %v617, %v435
  %v619 = vadd.f32 %v618, %v437
  %v620 = vadd.f32 %v619, %v440
  %v621 = vadd.f32 %v620, %v442
  %v622 = vadd.f32 %v621, %v445
  %v623 = vadd.f32 %v622, %v447
  %v624 = vadd.f32 %v623, %v450
  %v625 = vadd.f32 %v624, %v452
  %v626 = vadd.f32 %v625, %v455
  %v627 = vadd.f32 %v626, %v457
  %v628 = vadd.f32 %v627, %v460
  %v629 = vadd.f32 %v628, %v462
  %v630 = vadd.f32 %v629, %v465
  %v631 = vadd.f32 %v630, %v467
  %v632 = vadd.f32 %v631, %v470
  %v633 = vadd.f32 %v632, %v472
  %v634 = vadd.f32 %v633, %v475
  %v635 = vadd.f32 %v634, %v477
  %v636 = vadd.f32 %v635, %v480
  %v637 = vadd.f32 %v636, %v482
  %v638 = vadd.f32 %v637, %v485
  %v639 = vadd.f32 %v638, %v487
  %v640 = vadd.f32 %v639, %v490
  %v641 = vadd.f32 %v640, %v492
  %v642 = vadd.f32 %v641, %v495
  %v643 = vadd.f32 %v642, %v497
  %v644 = vadd.f32 %v643, %v500
  %v645 = vadd.f32 %v644, %v502
  %v646 = vadd.f32 %v645, %v505
  %v647 = vadd.f32 %v646, %v507
  %v648 = vadd.f32 %v647, %v510
  %v649 = vadd.f32 %v648, %v512
  %v650 = vadd.f32 %v649, %v515
  %v651 = vadd.f32 %v650, %v517
  %v652 = vadd.f32 %v651, %v520
  %v653 = vadd.f32 %v652, %v522
  %v654 = vadd.f32 %v653, %v525
  %v655 = vadd.f32 %v654, %v527
  %v656 = vrot.slane %v655, 4
  %v657 = vadd.f32 %v655, %v656
  %v658 = vrot.slane %v657, 2
  %v659 = vadd.f32 %v657, %v658
  %v660 = vrot.slane %v659, 1
  %v661 = vadd.f32 %v659, %v660
  %662 = vst [vmem:[%s3] sm:$0x1] %v661
  %v663 = vmul.f32 %v370, %v370
  %v664 = vmul.f32 %v372, %v372
  %v665 = vmul.f32 %v375, %v375
  %v666 = vmul.f32 %v377, %v377
  %v667 = vmul.f32 %v380, %v380
  %v668 = vmul.f32 %v382, %v382
  %v669 = vmul.f32 %v385, %v385
  %v670 = vmul.f32 %v387, %v387
  %v671 = vmul.f32 %v390, %v390
  %v672 = vmul.f32 %v392, %v392
  %v673 = vmul.f32 %v395, %v395
  %v674 = vmul.f32 %v397, %v397
  %v675 = vmul.f32 %v400, %v400
  %v676 = vmul.f32 %v402, %v402
  %v677 = vmul.f32 %v405, %v405
  %v678 = vmul.f32 %v407, %v407
  %v679 = vmul.f32 %v410, %v410
  %v680 = vmul.f32 %v412, %v412
  %v681 = vmul.f32 %v415, %v415
  %v682 = vmul.f32 %v417, %v417
  %v683 = vmul.f32 %v420, %v420
  %v684 = vmul.f32 %v422, %v422
  %v685 = vmul.f32 %v425, %v425
  %v686 = vmul.f32 %v427, %v427
  %v687 = vmul.f32 %v430, %v430
  %v688 = vmul.f32 %v432, %v432
  %v689 = vmul.f32 %v435, %v435
  %v690 = vmul.f32 %v437, %v437
  %v691 = vmul.f32 %v440, %v440
  %v692 = vmul.f32 %v442, %v442
  %v693 = vmul.f32 %v445, %v445
  %v694 = vmul.f32 %v447, %v447
  %v695 = vmul.f32 %v450, %v450
  %v696 = vmul.f32 %v452, %v452
  %v697 = vmul.f32 %v455, %v455
  %v698 = vmul.f32 %v457, %v457
  %v699 = vmul.f32 %v460, %v460
  %v700 = vmul.f32 %v462, %v462
  %v701 = vmul.f32 %v465, %v465
  %v702 = vmul.f32 %v467, %v467
  %v703 = vmul.f32 %v470, %v470
  %v704 = vmul.f32 %v472, %v472
  %v705 = vmul.f32 %v475, %v475
  %v706 = vmul.f32 %v477, %v477
  %v707 = vmul.f32 %v480, %v480
  %v708 = vmul.f32 %v482, %v482
  %v709 = vmul.f32 %v485, %v485
  %v710 = vmul.f32 %v487, %v487
  %v711 = vmul.f32 %v490, %v490
  %v712 = vmul.f32 %v492, %v492
  %v713 = vmul.f32 %v495, %v495
  %v714 = vmul.f32 %v497, %v497
  %v715 = vmul.f32 %v500, %v500
  %v716 = vmul.f32 %v502, %v502
  %v717 = vmul.f32 %v505, %v505
  %v718 = vmul.f32 %v507, %v507
  %v719 = vmul.f32 %v510, %v510
  %v720 = vmul.f32 %v512, %v512
  %v721 = vmul.f32 %v515, %v515
  %v722 = vmul.f32 %v517, %v517
  %v723 = vmul.f32 %v520, %v520
  %v724 = vmul.f32 %v522, %v522
  %v725 = vmul.f32 %v525, %v525
  %v726 = vmul.f32 %v527, %v527
  %v727 = vadd.f32 %v663, %v664
  %v728 = vadd.f32 %v727, %v665
  %v729 = vadd.f32 %v728, %v666
  %v730 = vadd.f32 %v729, %v667
  %v731 = vadd.f32 %v730, %v668
  %v732 = vadd.f32 %v731, %v669
  %v733 = vadd.f32 %v732, %v670
  %v734 = vadd.f32 %v733, %v671
  %v735 = vadd.f32 %v734, %v672
  %v736 = vadd.f32 %v735, %v673
  %v737 = vadd.f32 %v736, %v674
  %v738 = vadd.f32 %v737, %v675
  %v739 = vadd.f32 %v738, %v676
  %v740 = vadd.f32 %v739, %v677
  %v741 = vadd.f32 %v740, %v678
  %v742 = vadd.f32 %v741, %v679
  %v743 = vadd.f32 %v742, %v680
  %v744 = vadd.f32 %v743, %v681
  %v745 = vadd.f32 %v744, %v682
  %v746 = vadd.f32 %v745, %v683
  %v747 = vadd.f32 %v746, %v684
  %v748 = vadd.f32 %v747, %v685
  %v749 = vadd.f32 %v748, %v686
  %v750 = vadd.f32 %v749, %v687
  %v751 = vadd.f32 %v750, %v688
  %v752 = vadd.f32 %v751, %v689
  %v753 = vadd.f32 %v752, %v690
  %v754 = vadd.f32 %v753, %v691
  %v755 = vadd.f32 %v754, %v692
  %v756 = vadd.f32 %v755, %v693
  %v757 = vadd.f32 %v756, %v694
  %v758 = vadd.f32 %v757, %v695
  %v759 = vadd.f32 %v758, %v696
  %v760 = vadd.f32 %v759, %v697
  %v761 = vadd.f32 %v760, %v698
  %v762 = vadd.f32 %v761, %v699
  %v763 = vadd.f32 %v762, %v700
  %v764 = vadd.f32 %v763, %v701
  %v765 = vadd.f32 %v764, %v702
  %v766 = vadd.f32 %v765, %v703
  %v767 = vadd.f32 %v766, %v704
  %v768 = vadd.f32 %v767, %v705
  %v769 = vadd.f32 %v768, %v706
  %v770 = vadd.f32 %v769, %v707
  %v771 = vadd.f32 %v770, %v708
  %v772 = vadd.f32 %v771, %v709
  %v773 = vadd.f32 %v772, %v710
  %v774 = vadd.f32 %v773, %v711
  %v775 = vadd.f32 %v774, %v712
  %v776 = vadd.f32 %v775, %v713
  %v777 = vadd.f32 %v776, %v714
  %v778 = vadd.f32 %v777, %v715
  %v779 = vadd.f32 %v778, %v716
  %v780 = vadd.f32 %v779, %v717
  %v781 = vadd.f32 %v780, %v718
  %v782 = vadd.f32 %v781, %v719
  %v783 = vadd.f32 %v782, %v720
  %v784 = vadd.f32 %v783, %v721
  %v785 = vadd.f32 %v784, %v722
  %v786 = vadd.f32 %v785, %v723
  %v787 = vadd.f32 %v786, %v724
  %v788 = vadd.f32 %v787, %v725
  %v789 = vadd.f32 %v788, %v726
  %v790 = vrot.slane %v789, 4
  %v791 = vadd.f32 %v789, %v790
  %v792 = vrot.slane %v791, 2
  %v793 = vadd.f32 %v791, %v792
  %v794 = vrot.slane %v793, 1
  %v795 = vadd.f32 %v793, %v794
  %796 = vst [vmem:[%s4] sm:$0x1] %v795
  // Predicated region
  $region10: #{conv_module_forward.1} parent=0 // pred_check
    _
  $region11: #{conv_module_forward.1} parent=0 // pred_check_branch
    %798 = sbr.rel (0) target = $region13
  $region12: #{conv_module_forward.1} parent=0 // pred_region
    _
  $region13: #{conv_module_forward.1} parent=0 // pred_fallthru
    _
  // Predicated region
  $region14: #{conv_module_forward.1} parent=0 // pred_check
    _
  $region15: #{conv_module_forward.1} parent=0 // pred_check_branch
    %800 = sbr.rel (0) target = $region17
  $region16: #{conv_module_forward.1} parent=0 // pred_region
    _
  $region17: #{conv_module_forward.1} parent=0 // pred_fallthru
    _
  // Predicated region
  $region18: #{conv_module_forward.1} parent=0 // pred_check
    _
  $region19: #{conv_module_forward.1} parent=0 // pred_check_branch
    %802 = sbr.rel (0) target = $region21
  $region20: #{conv_module_forward.1} parent=0 // pred_region
    _
  $region21: #{conv_module_forward.1} parent=0 // pred_fallthru
    _
  // Predicated region
  $region22: #{conv_module_forward.1} parent=0 // pred_check
    _
  $region23: #{conv_module_forward.1} parent=0 // pred_check_branch
    %804 = sbr.rel (0) target = $region25
  $region24: #{conv_module_forward.1} parent=0 // pred_region
    _
  $region25: #{conv_module_forward.1} parent=0 // pred_fallthru
    _
  // Predicated region
  $region26: #{conv_module_forward.1} parent=0 // pred_check
    _
  $region27: #{conv_module_forward.1} parent=0 // pred_check_branch
    %806 = sbr.rel (0) target = $region29
  $region28: #{conv_module_forward.1} parent=0 // pred_region
    _
  $region29: #{conv_module_forward.1} parent=0 // pred_fallthru
    _
  // Predicated region
  $region30: #{conv_module_forward.1} parent=0 // pred_check
    _
  $region31: #{conv_module_forward.1} parent=0 // pred_check_branch
    %808 = sbr.rel (0) target = $region33
  $region32: #{conv_module_forward.1} parent=0 // pred_region
    _
  $region33: #{conv_module_forward.1} parent=0 // pred_fallthru
    _

</llo_original>
